<compile_context>
chip_gen: v5e
topology: v5e:2x2
jax: 0.10.0
libtpu: 0.0.40
codegen_flags: <defaults>
</compile_context>

<pallas_src>
import jax
import jax.numpy as jnp
from jax.experimental import pallas as pl
from jax.experimental.pallas import tpu as pltpu


# Up to this many concurrent DMA descriptors per tensor (chunked on leading dim).
_MAX_DMA_CHUNKS = 8
# Do not bother splitting a tensor into chunks smaller than this.
_MIN_DMA_CHUNK_BYTES = 512 * 1024


def _chunk_bounds(dim0, total_bytes):
    """Static (start, size) chunks along the leading dim for one tensor."""
    n = max(1, min(dim0, _MAX_DMA_CHUNKS, total_bytes // _MIN_DMA_CHUNK_BYTES))
    base, rem = divmod(dim0, n)
    bounds, start = [], 0
    for i in range(n):
        size = base + (1 if i < rem else 0)
        bounds.append((start, size))
        start += size
    return bounds


def _make_dma_copy_kernel(chunk_bounds_per_tensor):
    """Kernel factory: fused HBM->HBM identity copy of T tensors.

    Kernel args: T input HBM refs, T output HBM refs, one DMA-semaphore array.
    All chunk DMAs are started first (so the DMA engines overlap work across
    tensors and chunks), then all are waited on.  Safe because every output
    chunk is written from the byte-identical input chunk (pure identity).
    """
    n_tensors = len(chunk_bounds_per_tensor)

    def kernel(*refs):
        in_refs = refs[:n_tensors]
        out_refs = refs[n_tensors:2 * n_tensors]
        sems = refs[2 * n_tensors]
        copies = []
        for t in range(n_tensors):
            for c, (start, size) in enumerate(chunk_bounds_per_tensor[t]):
                cp = pltpu.make_async_copy(
                    in_refs[t].at[pl.ds(start, size)],
                    out_refs[t].at[pl.ds(start, size)],
                    sems.at[t, c],
                )
                cp.start()
                copies.append(cp)
        for cp in copies:
            cp.wait()

    return kernel


def _pallas_identity_copy_many(tensors):
    """One fused pallas_call copying every tensor HBM->HBM (no VMEM staging)."""
    bounds = []
    total_bytes_all = 0
    for x in tensors:
        nbytes = x.size * jnp.dtype(x.dtype).itemsize
        total_bytes_all += nbytes
        bounds.append(_chunk_bounds(x.shape[0], nbytes))
    max_chunks = max(len(b) for b in bounds)

    any_spec = pl.BlockSpec(memory_space=pl.ANY)  # raw HBM ref, no auto-DMA
    out_shapes = tuple(jax.ShapeDtypeStruct(x.shape, x.dtype) for x in tensors)

    outs = pl.pallas_call(
        _make_dma_copy_kernel(bounds),
        out_shape=out_shapes,
        in_specs=[any_spec] * len(tensors),
        out_specs=tuple(any_spec for _ in tensors),
        scratch_shapes=[pltpu.SemaphoreType.DMA((len(tensors), max_chunks))],
        cost_estimate=pl.CostEstimate(
            flops=0,
            transcendentals=0,
            bytes_accessed=2 * total_bytes_all,  # read + write of every tensor
        ),
    )(*tensors)
    return outs


def pallas_identity_copy(*tensors):
    """Explicit identity copy of one or more tensors via direct HBM->HBM DMA.

    0-d and empty tensors are passed through by aliasing (nothing to DMA).
    """
    tensors = list(tensors)
    copy_idx = [i for i, x in enumerate(tensors) if x.ndim >= 1 and x.size > 0]
    results = list(tensors)
    if copy_idx:
        copied = _pallas_identity_copy_many([tensors[i] for i in copy_idx])
        for i, y in zip(copy_idx, copied):
            results[i] = y
    if len(results) == 1:
        return results[0]
    return tuple(results)


class IdentityAttention:
    """JAX/Pallas equivalent of the IDENTITY attention module.

    align_first=False  =>  input suffix '_features', output suffix '_p1'.
    The module has NO parameters.

    use_pallas_copy=False (default, recommended): pure pass-through aliasing,
    zero HBM traffic — identical semantics to the PyTorch module, which simply
    stores the same tensor references under new keys.
    use_pallas_copy=True: route both tensors through one fused pallas_call that
    issues direct HBM->HBM DMAs (no VMEM staging, no padding / reshaping).
    Note: the explicit copy still costs one HBM read + one HBM write per
    tensor; it cannot be "elided".
    """

    def __init__(self, align_first=False, use_pallas_copy=False):
        self.input_name = "_features" if not align_first else "_p1"
        self.output_name = "_p1" if not align_first else "_p2"
        self.use_pallas_copy = use_pallas_copy

    def forward(self, features):
        query_features = features["query" + self.input_name]
        support_features = features["support" + self.input_name]
        _support_targets = features["support_targets"]  # read but unused, as in PyTorch

        if self.use_pallas_copy:
            query_out, support_out = pallas_identity_copy(
                query_features, support_features
            )
        else:
            # Zero-cost identity: alias the inputs (matches PyTorch exactly).
            query_out, support_out = query_features, support_features

        features.update(
            {
                "query" + self.output_name: query_out,
                "support" + self.output_name: support_out,
            }
        )
        return features


if __name__ == "__main__":
    key = jax.random.PRNGKey(0)
    kq, ks = jax.random.split(key)

    B, N_support, C, H, W = 2, 3, 4, 16, 16

    # query features: B x N_support x C x H x W
    query = jax.random.normal(kq, (B, N_support, C, H, W), dtype=jnp.float32)
    # support features: N_support x B x C x H x W
    support = jax.random.normal(ks, (N_support, B, C, H, W), dtype=jnp.float32)

    features = {
        "query_features": query,
        "support_features": support,
        "support_targets": None,  # targets are untouched by IDENTITY
    }

    # Recommended zero-cost path: pure aliasing, no kernel launched at all.
    alias_module = IdentityAttention(align_first=False, use_pallas_copy=False)
    alias_out = alias_module.forward(dict(features))
    assert alias_out["query_p1"] is query
    assert alias_out["support_p1"] is support

    # Explicit-copy path: one fused pallas_call doing direct HBM->HBM DMA.
    kernel_module = IdentityAttention(align_first=False, use_pallas_copy=True)
    out = kernel_module.forward(dict(features))

    q_out = jax.block_until_ready(out["query_p1"])
    s_out = jax.block_until_ready(out["support_p1"])

    assert q_out.shape == query.shape and q_out.dtype == query.dtype
    assert s_out.shape == support.shape and s_out.dtype == support.dtype
    assert bool(jnp.array_equal(q_out, query)) and bool(jnp.array_equal(s_out, support))

    print("KERNEL_OK")
</pallas_src>

<mosaic_0001>
module attributes {stable_mosaic.version = 11 : i64} {
  func.func @kernel(%arg0: memref<2x3x4x16x16xf32, #tpu.memory_space<any>>, %arg1: memref<3x2x4x16x16xf32, #tpu.memory_space<any>>, %arg2: memref<2x3x4x16x16xf32, #tpu.memory_space<any>>, %arg3: memref<3x2x4x16x16xf32, #tpu.memory_space<any>>, %arg4: memref<2x1x!tpu.dma_semaphore, #tpu.memory_space<semaphore_mem>>) attributes {dimension_semantics = [], scalar_prefetch = 0 : i64, scratch_operands = 1 : i64, tpu.core_type = #tpu.core_type<tc>} {
    %c0_i32 = arith.constant 0 : i32
    %c0_i32_0 = arith.constant 0 : i32
    %c0_i32_1 = arith.constant 0 : i32
    %c0_i32_2 = arith.constant 0 : i32
    %c0_i32_3 = arith.constant 0 : i32
    %c0_i32_4 = arith.constant 0 : i32
    %c0_i32_5 = arith.constant 0 : i32
    %0 = tpu.memref_slice %arg0[%c0_i32_1, %c0_i32_2, %c0_i32_3, %c0_i32_4, %c0_i32_5] : memref<2x3x4x16x16xf32, #tpu.memory_space<any>> -> memref<2x3x4x16x16xf32, #tpu.memory_space<any>>
    %c0_i32_6 = arith.constant 0 : i32
    %c0_i32_7 = arith.constant 0 : i32
    %c0_i32_8 = arith.constant 0 : i32
    %c0_i32_9 = arith.constant 0 : i32
    %c0_i32_10 = arith.constant 0 : i32
    %1 = tpu.memref_slice %arg2[%c0_i32_6, %c0_i32_7, %c0_i32_8, %c0_i32_9, %c0_i32_10] : memref<2x3x4x16x16xf32, #tpu.memory_space<any>> -> memref<2x3x4x16x16xf32, #tpu.memory_space<any>>
    %2 = tpu.memref_slice %arg4[%c0_i32, %c0_i32_0] : memref<2x1x!tpu.dma_semaphore, #tpu.memory_space<semaphore_mem>> -> memref<1x1x!tpu.dma_semaphore, #tpu.memory_space<semaphore_mem>>
    %3 = tpu.memref_squeeze %2 : memref<1x1x!tpu.dma_semaphore, #tpu.memory_space<semaphore_mem>> -> memref<!tpu.dma_semaphore, #tpu.memory_space<semaphore_mem>>
    tpu.enqueue_dma source(%0 : memref<2x3x4x16x16xf32, #tpu.memory_space<any>>) target(%1 : memref<2x3x4x16x16xf32, #tpu.memory_space<any>>) target_semaphore(%3 : memref<!tpu.dma_semaphore, #tpu.memory_space<semaphore_mem>>)
    %c1_i32 = arith.constant 1 : i32
    %c0_i32_11 = arith.constant 0 : i32
    %c0_i32_12 = arith.constant 0 : i32
    %c0_i32_13 = arith.constant 0 : i32
    %c0_i32_14 = arith.constant 0 : i32
    %c0_i32_15 = arith.constant 0 : i32
    %c0_i32_16 = arith.constant 0 : i32
    %4 = tpu.memref_slice %arg1[%c0_i32_12, %c0_i32_13, %c0_i32_14, %c0_i32_15, %c0_i32_16] : memref<3x2x4x16x16xf32, #tpu.memory_space<any>> -> memref<3x2x4x16x16xf32, #tpu.memory_space<any>>
    %c0_i32_17 = arith.constant 0 : i32
    %c0_i32_18 = arith.constant 0 : i32
    %c0_i32_19 = arith.constant 0 : i32
    %c0_i32_20 = arith.constant 0 : i32
    %c0_i32_21 = arith.constant 0 : i32
    %5 = tpu.memref_slice %arg3[%c0_i32_17, %c0_i32_18, %c0_i32_19, %c0_i32_20, %c0_i32_21] : memref<3x2x4x16x16xf32, #tpu.memory_space<any>> -> memref<3x2x4x16x16xf32, #tpu.memory_space<any>>
    %6 = tpu.memref_slice %arg4[%c1_i32, %c0_i32_11] : memref<2x1x!tpu.dma_semaphore, #tpu.memory_space<semaphore_mem>> -> memref<1x1x!tpu.dma_semaphore, #tpu.memory_space<semaphore_mem>>
    %7 = tpu.memref_squeeze %6 : memref<1x1x!tpu.dma_semaphore, #tpu.memory_space<semaphore_mem>> -> memref<!tpu.dma_semaphore, #tpu.memory_space<semaphore_mem>>
    tpu.enqueue_dma source(%4 : memref<3x2x4x16x16xf32, #tpu.memory_space<any>>) target(%5 : memref<3x2x4x16x16xf32, #tpu.memory_space<any>>) target_semaphore(%7 : memref<!tpu.dma_semaphore, #tpu.memory_space<semaphore_mem>>)
    %c0_i32_22 = arith.constant 0 : i32
    %c0_i32_23 = arith.constant 0 : i32
    %c0_i32_24 = arith.constant 0 : i32
    %c0_i32_25 = arith.constant 0 : i32
    %c0_i32_26 = arith.constant 0 : i32
    %c0_i32_27 = arith.constant 0 : i32
    %c0_i32_28 = arith.constant 0 : i32
    %8 = tpu.memref_slice %arg0[%c0_i32_24, %c0_i32_25, %c0_i32_26, %c0_i32_27, %c0_i32_28] : memref<2x3x4x16x16xf32, #tpu.memory_space<any>> -> memref<2x3x4x16x16xf32, #tpu.memory_space<any>>
    %c0_i32_29 = arith.constant 0 : i32
    %c0_i32_30 = arith.constant 0 : i32
    %c0_i32_31 = arith.constant 0 : i32
    %c0_i32_32 = arith.constant 0 : i32
    %c0_i32_33 = arith.constant 0 : i32
    %9 = tpu.memref_slice %arg2[%c0_i32_29, %c0_i32_30, %c0_i32_31, %c0_i32_32, %c0_i32_33] : memref<2x3x4x16x16xf32, #tpu.memory_space<any>> -> memref<2x3x4x16x16xf32, #tpu.memory_space<any>>
    %10 = tpu.memref_slice %arg4[%c0_i32_22, %c0_i32_23] : memref<2x1x!tpu.dma_semaphore, #tpu.memory_space<semaphore_mem>> -> memref<1x1x!tpu.dma_semaphore, #tpu.memory_space<semaphore_mem>>
    %11 = tpu.memref_squeeze %10 : memref<1x1x!tpu.dma_semaphore, #tpu.memory_space<semaphore_mem>> -> memref<!tpu.dma_semaphore, #tpu.memory_space<semaphore_mem>>
    tpu.wait_dma2 semaphore(%11 : memref<!tpu.dma_semaphore, #tpu.memory_space<semaphore_mem>>) src(%8 : memref<2x3x4x16x16xf32, #tpu.memory_space<any>>) dst(%9 : memref<2x3x4x16x16xf32, #tpu.memory_space<any>>)
    %c1_i32_34 = arith.constant 1 : i32
    %c0_i32_35 = arith.constant 0 : i32
    %c0_i32_36 = arith.constant 0 : i32
    %c0_i32_37 = arith.constant 0 : i32
    %c0_i32_38 = arith.constant 0 : i32
    %c0_i32_39 = arith.constant 0 : i32
    %c0_i32_40 = arith.constant 0 : i32
    %12 = tpu.memref_slice %arg1[%c0_i32_36, %c0_i32_37, %c0_i32_38, %c0_i32_39, %c0_i32_40] : memref<3x2x4x16x16xf32, #tpu.memory_space<any>> -> memref<3x2x4x16x16xf32, #tpu.memory_space<any>>
    %c0_i32_41 = arith.constant 0 : i32
    %c0_i32_42 = arith.constant 0 : i32
    %c0_i32_43 = arith.constant 0 : i32
    %c0_i32_44 = arith.constant 0 : i32
    %c0_i32_45 = arith.constant 0 : i32
    %13 = tpu.memref_slice %arg3[%c0_i32_41, %c0_i32_42, %c0_i32_43, %c0_i32_44, %c0_i32_45] : memref<3x2x4x16x16xf32, #tpu.memory_space<any>> -> memref<3x2x4x16x16xf32, #tpu.memory_space<any>>
    %14 = tpu.memref_slice %arg4[%c1_i32_34, %c0_i32_35] : memref<2x1x!tpu.dma_semaphore, #tpu.memory_space<semaphore_mem>> -> memref<1x1x!tpu.dma_semaphore, #tpu.memory_space<semaphore_mem>>
    %15 = tpu.memref_squeeze %14 : memref<1x1x!tpu.dma_semaphore, #tpu.memory_space<semaphore_mem>> -> memref<!tpu.dma_semaphore, #tpu.memory_space<semaphore_mem>>
    tpu.wait_dma2 semaphore(%15 : memref<!tpu.dma_semaphore, #tpu.memory_space<semaphore_mem>>) src(%12 : memref<3x2x4x16x16xf32, #tpu.memory_space<any>>) dst(%13 : memref<3x2x4x16x16xf32, #tpu.memory_space<any>>)
    return
  }
}

</mosaic_0001>

<llo_original>
// kernel: tpu_custom_call.1
$region0: #{tpu_custom_call.1}
  #allocation0 [shape = 'u32[]', space=smem, size = 0x4, offset = 0x4, fixed_abs, tag = 'smem constant byte address 0x4 - core index']
  #allocation1 [shape = 'u32[72,128]{1,0:T(1,128)}', space=vmem, size = 0x9000, scoped, tag = 'internal scratch']
  #allocation2 [shape = 's32[2]{0}', space=sflag, size = 0x8, scoped, tag = 'scratch operand']
  #allocation3 [shape = 's32[]', space=sflag, size = 0x4, offset = 0, fixed_abs, tag = 'sflag constant byte address 0x0 - dummy sync flag']
  #allocation4 [shape = 'u32[0]{0}', space=smem, size = 0, offset = 0, fixed_abs, tag = 'smem constant byte address 0x0 - null']
  #allocation5 [shape = 's32[]', space=sflag, size = 0x4, offset = 0, fixed_abs, tag = 'sflag constant byte address 0x0 - dummy sync flag']
  #allocation6 [shape = 'u32[0]{0}', space=smem, size = 0, offset = 0, fixed_abs, tag = 'smem constant byte address 0x0 - null']
  %s0 = inlined_call_operand.hbm [shape: f32[2,3,4,16,16], index: 0, kind: input, shape index: {}]
  %s1 = inlined_call_operand.hbm [shape: f32[3,2,4,16,16], index: 1, kind: input, shape index: {}]
  %s2 = inlined_call_operand.hbm [shape: f32[2,3,4,16,16], index: 2, kind: output, shape index: {0}]
  %s3 = inlined_call_operand.hbm [shape: f32[3,2,4,16,16], index: 3, kind: output, shape index: {1}]
  %4 = xla_tuple %s2, %s3
  %s5 = sld [smem:[#allocation0]]
  $region2: #{tpu_custom_call.1} parent=0
    _
  %s7 = ssub.s32 1, %s5
  %s8 = scalar_select 0, %s7, %s5
  %s10 = sshll.u32 1, 14
  %s11 = sxor.u32 4294967295, %s10
  %s13 = sshll.u32 %s0, 4
  %s14 = int_to_ptr.hbm [resolvable:$true] %s13
  %s15 = sshll.u32 %s2, 4
  %s16 = int_to_ptr.hbm [resolvable:$true] %s15
  %19 = dma.general %s14, 6144, %s16, [#allocation2], [#allocation3], [#allocation4], 0, 0
  %s20 = scalar_lea.sflag [#allocation2], 1
  %s22 = sshll.u32 1, 14
  %s23 = sxor.u32 4294967295, %s22
  %s25 = sshll.u32 %s1, 4
  %s26 = int_to_ptr.hbm [resolvable:$true] %s25
  %s27 = sshll.u32 %s3, 4
  %s28 = int_to_ptr.hbm [resolvable:$true] %s27
  %31 = dma.general %s26, 6144, %s28, %s20, [#allocation5], [#allocation6], 0, 0
  %s32 = smul.u32 2, 3
  %s33 = smul.u32 %s32, 4
  %s34 = smul.u32 %s33, 16
  %s35 = smul.u32 %s34, 1
  %s36 = sshll.u32 %s35, 4
  %37 = dma.done [#allocation2], %s36
  %s38 = smul.u32 3, 2
  %s39 = smul.u32 %s38, 4
  %s40 = smul.u32 %s39, 16
  %s41 = smul.u32 %s40, 1
  %s42 = sshll.u32 %s41, 4
  %43 = dma.done %s20, %s42
  %44 = vsyncmov [#allocation2]
  %s45 = vpop.sfrf %44
  %p46 = scmp.eq.s32.totalorder %s45, 0
  %p47 = pneg %p46
  %49 = shalt.err (%p47)
  %s50 = scalar_lea.sflag [#allocation2], 1
  %51 = vsyncmov %s50
  %s52 = vpop.sfrf %51
  %p53 = scmp.eq.s32.totalorder %s52, 0
  %p54 = pneg %p53
  %56 = shalt.err (%p54)

</llo_original>
